<compile_context>
chip_gen: v7x
topology: tpu7x:2x2x1
jax: 0.10.0
libtpu: 0.0.40
codegen_flags: <defaults>
</compile_context>

<pallas_src>
import jax
import jax.numpy as jnp
from jax.experimental import pallas as pl
from jax.experimental.pallas import tpu as pltpu

FEAT_DIM = 4096
NUM_CLASSES = 10
SUBLANE_PAD = 16  # bf16 sublane packing: one vreg holds [16, 128]


def linear_kernel(x_ref, w_ref, b_ref, o_ref):
    """Single-shot: o = x @ w.T + b, everything resident in VMEM.

    x_ref: [B, K]  f32   (cast to bf16 for the MXU)
    w_ref: [Np, K] bf16  (PyTorch layout, K lane-dense)
    b_ref: [1, Np] f32
    o_ref: [B, Np] f32
    """
    x = x_ref[...].astype(jnp.bfloat16)
    w = w_ref[...]
    acc = jax.lax.dot_general(
        x, w,
        dimension_numbers=(((1,), (1,)), ((), ())),  # contract K with K
        preferred_element_type=jnp.float32,          # f32 MXU accumulation
    )                                                # [B, Np] f32
    o_ref[...] = acc + b_ref[...]                    # bias broadcast, f32


def prepare_params(weight, bias, *, pad_to=SUBLANE_PAD):
    """One-time host-side prep (outside the inference path):
    keep PyTorch layout [N, K], pad N up to the bf16 sublane tile, cast the
    weight to bf16; bias stays f32 as [1, N_pad]."""
    n, k = weight.shape
    n_pad = ((n + pad_to - 1) // pad_to) * pad_to
    w_padded = (
        jnp.zeros((n_pad, k), jnp.bfloat16).at[:n, :].set(weight.astype(jnp.bfloat16))
    )
    b_padded = jnp.zeros((1, n_pad), jnp.float32).at[0, :n].set(bias.astype(jnp.float32))
    return w_padded, b_padded


def linear_classifier(features, weight_padded, bias_padded, num_classes=NUM_CLASSES):
    """features: [B, feat_dim] f32, weight_padded: [N_pad, feat_dim] bf16,
    bias_padded: [1, N_pad] f32 -> [B, num_classes] f32."""
    B, K = features.shape
    Np, Kw = weight_padded.shape
    assert Kw == K, f"weight K ({Kw}) must match feature dim ({K})"

    bytes_accessed = (
        features.size * features.dtype.itemsize
        + weight_padded.size * weight_padded.dtype.itemsize
        + bias_padded.size * bias_padded.dtype.itemsize
        + B * Np * 4
    )
    cost = pl.CostEstimate(
        flops=2 * B * K * Np,
        bytes_accessed=bytes_accessed,
        transcendentals=0,
    )

    out_padded = pl.pallas_call(
        linear_kernel,
        out_shape=jax.ShapeDtypeStruct((B, Np), jnp.float32),
        # No grid: single invocation, full arrays resident in VMEM (<0.5 MiB).
        in_specs=[
            pl.BlockSpec(memory_space=pltpu.MemorySpace.VMEM),  # features
            pl.BlockSpec(memory_space=pltpu.MemorySpace.VMEM),  # weight [Np, K]
            pl.BlockSpec(memory_space=pltpu.MemorySpace.VMEM),  # bias [1, Np]
        ],
        out_specs=pl.BlockSpec(memory_space=pltpu.MemorySpace.VMEM),
        cost_estimate=cost,
    )(features, weight_padded, bias_padded)

    # Drop the sublane padding (tiny [B, 16] slice).
    return out_padded[:, :num_classes]


if __name__ == "__main__":
    key = jax.random.PRNGKey(0)
    k_x, k_w, k_b = jax.random.split(key, 3)

    B = 8  # small batch
    # Deterministic synthetic parameters (PyTorch-like uniform init bound).
    bound = 1.0 / jnp.sqrt(jnp.float32(FEAT_DIM))
    weight = jax.random.uniform(
        k_w, (NUM_CLASSES, FEAT_DIM), jnp.float32, -bound, bound
    )  # PyTorch layout [out, in]
    bias = jax.random.uniform(k_b, (NUM_CLASSES,), jnp.float32, -bound, bound)
    features = jax.random.normal(k_x, (B, FEAT_DIM), jnp.float32)

    # One-time parameter prep (pad + bf16 cast), outside the hot path.
    weight_padded, bias_padded = prepare_params(weight, bias)
    weight_padded = jax.block_until_ready(weight_padded)
    bias_padded = jax.block_until_ready(bias_padded)

    out = linear_classifier(features, weight_padded, bias_padded)
    out = jax.block_until_ready(out)

    assert out.shape == (B, NUM_CLASSES)

    # Tight check against a bf16-matched reference (same math as the kernel).
    ref_bf16 = (
        jnp.dot(
            features.astype(jnp.bfloat16),
            weight.astype(jnp.bfloat16).T,
            preferred_element_type=jnp.float32,
        )
        + bias[None, :]
    )
    assert jnp.allclose(out, ref_bf16, atol=1e-3, rtol=1e-3)

    # Looser check against the pure-f32 nn.Linear reference (bf16 weight cast
    # introduces ~1e-2-level relative differences, as expected).
    ref_f32 = features @ weight.T + bias[None, :]
    assert jnp.allclose(out, ref_f32, atol=3e-2, rtol=3e-2)

    print("KERNEL_OK")
</pallas_src>

<mosaic_0001>
module attributes {stable_mosaic.version = 11 : i64} {
  func.func @linear_kernel(%arg0: memref<8x4096xf32, #tpu.memory_space<vmem>>, %arg1: memref<16x4096xbf16, #tpu.memory_space<vmem>>, %arg2: memref<1x16xf32, #tpu.memory_space<vmem>>, %arg3: memref<8x16xf32, #tpu.memory_space<vmem>>) attributes {dimension_semantics = [], scalar_prefetch = 0 : i64, scratch_operands = 0 : i64, tpu.core_type = #tpu.core_type<tc>} {
    %c0 = arith.constant 0 : index
    %c0_0 = arith.constant 0 : index
    %0 = vector.load %arg0[%c0, %c0_0] : memref<8x4096xf32, #tpu.memory_space<vmem>>, vector<8x4096xf32>
    %1 = arith.truncf %0 : vector<8x4096xf32> to vector<8x4096xbf16>
    %c0_1 = arith.constant 0 : index
    %c0_2 = arith.constant 0 : index
    %2 = vector.load %arg1[%c0_1, %c0_2] : memref<16x4096xbf16, #tpu.memory_space<vmem>>, vector<16x4096xbf16>
    %cst = arith.constant dense<0.000000e+00> : vector<8x16xf32>
    %3 = tpu.matmul %1, %2, %cst {dimension_numbers = #tpu.dot_dimension_numbers<[1], [1], [0], [0], [0, 0, 1, 0], [], []>} : vector<8x4096xbf16>, vector<16x4096xbf16>, vector<8x16xf32> -> vector<8x16xf32>
    %c0_3 = arith.constant 0 : index
    %c0_4 = arith.constant 0 : index
    %4 = vector.load %arg2[%c0_3, %c0_4] : memref<1x16xf32, #tpu.memory_space<vmem>>, vector<1x16xf32>
    %5 = vector.broadcast %4 : vector<1x16xf32> to vector<8x16xf32>
    %6 = arith.addf %3, %5 : vector<8x16xf32>
    %c0_5 = arith.constant 0 : index
    %c0_6 = arith.constant 0 : index
    %7 = vector.load %arg3[%c0_5, %c0_6] : memref<8x16xf32, #tpu.memory_space<vmem>>, vector<8x16xf32>
    tpu.vector_store %arg3[%c0_5, %c0_6], %6 {strides = array<i32>} : memref<8x16xf32, #tpu.memory_space<vmem>>, vector<8x16xf32>,
    return
  }
}

</mosaic_0001>

<llo_original>
// kernel: tpu_custom_call.1
$region0: #{tpu_custom_call.1}
  #allocation0 [shape = 'u32[]', space=smem, size = 0x4, offset = 0x4, fixed_abs, tag = 'smem constant byte address 0x4 - core index']
  #allocation1 [shape = 'u32[144,128]{1,0:T(1,128)}', space=vmem, size = 0x12000, scoped, tag = 'internal scratch']
  %s0 = inlined_call_operand.hbm [shape: f32[8,4096], index: 0, kind: input, shape index: {}]
  %s1 = inlined_call_operand.hbm [shape: bf16[16,4096], index: 1, kind: input, shape index: {}]
  %s2 = inlined_call_operand.vmem [shape: f32[1,16], index: 2, kind: input, shape index: {}]
  %s3 = inlined_call_operand.hbm [shape: f32[8,16], index: 3, kind: output, shape index: {}]
  %s4 = sld [smem:[#allocation0]]
  $region30: #{tpu_custom_call.1} parent=0
    _
  %s6 = ssub.s32 1, %s4
  %s7 = scalar_select 0, %s6, %s4
  $region1: #{tpu_custom_call.1} parent=0
    #allocation2 [shape = 'u8[131072]{0}', space=vmem, size = 0x20000, scoped, tag = 'input window, operand 0, single buffered']
    #allocation3 [shape = 's32[1]{0}', space=sflag, size = 0x4, scoped, tag = 'scoped memory for tpu_custom_call.1']
    #allocation4 [shape = 's32[1]{0}', space=sflag, size = 0x4, scoped, tag = 'scoped memory for tpu_custom_call.1']
    #allocation5 [shape = 'u8[131072]{0}', space=vmem, size = 0x20000, scoped, tag = 'input window, operand 1, single buffered']
    #allocation6 [shape = 's32[1]{0}', space=sflag, size = 0x4, scoped, tag = 'scoped memory for tpu_custom_call.1']
    #allocation7 [shape = 'u8[4096]{0}', space=vmem, size = 0x1000, scoped, tag = 'output window, operand 0, single buffered']
    %8 = vsyncpa [#allocation3], 0
    %9 = vsyncpa [#allocation6], 0
    %10 = vsyncpa [#allocation4], 0
    // Predicated region
    $region2: #{tpu_custom_call.1} parent=1 // pred_check
      _
    $region3: #{tpu_custom_call.1} parent=1 // pred_check_branch
      %12 = sbr.rel (0) target = $region5
    $region4: #{tpu_custom_call.1} parent=1 // pred_region
      %s14 = ssub.s32 4096, 4096
      %15 = vsyncadd [#allocation3], %s14
      %s17 = sshll.u32 [#allocation2], 4
      %s18 = int_to_ptr.vmem [resolvable:$true] %s17
      %20 = dma.hbm_to_vmem [thread:$0]  %s0, 4096, %s18, [#allocation3]
    $region5: #{tpu_custom_call.1} parent=1 // pred_fallthru
      _
    // Predicated region
    $region6: #{tpu_custom_call.1} parent=1 // pred_check
      _
    $region7: #{tpu_custom_call.1} parent=1 // pred_check_branch
      %22 = sbr.rel (0) target = $region9
    $region8: #{tpu_custom_call.1} parent=1 // pred_region
      %s24 = ssub.s32 4096, 4096
      %25 = vsyncadd [#allocation6], %s24
      %s26 = sshll.u32 [#allocation5], 4
      %s27 = int_to_ptr.vmem [resolvable:$true] %s26
      %32 = dma.hbm_to_vmem [thread:$0]  %s1, 4096, %s27, [#allocation6], 2048, 2048, 128
    $region9: #{tpu_custom_call.1} parent=1 // pred_fallthru
      _
    // Predicated region
    $region10: #{tpu_custom_call.1} parent=1 // pred_check
      _
    $region11: #{tpu_custom_call.1} parent=1 // pred_check_branch
      %34 = sbr.rel (0) target = $region13
    $region12: #{tpu_custom_call.1} parent=1 // pred_region
      _
    $region13: #{tpu_custom_call.1} parent=1 // pred_fallthru
      _
    // Predicated region
    $region14: #{tpu_custom_call.1} parent=1 // pred_check
      _
    $region15: #{tpu_custom_call.1} parent=1 // pred_check_branch
      %36 = sbr.rel (0) target = $region17
    $region16: #{tpu_custom_call.1} parent=1 // pred_region
      %37 = dma.done [#allocation3], 4096
    $region17: #{tpu_custom_call.1} parent=1 // pred_fallthru
      _
    // Predicated region
    $region18: #{tpu_custom_call.1} parent=1 // pred_check
      _
    $region19: #{tpu_custom_call.1} parent=1 // pred_check_branch
      %39 = sbr.rel (0) target = $region21
    $region20: #{tpu_custom_call.1} parent=1 // pred_region
      %40 = dma.done [#allocation6], 4096
    $region21: #{tpu_custom_call.1} parent=1 // pred_fallthru
      _
    %v42 = vld [vmem:[#allocation2] sm:$0xff]
    %v43 = vld [vmem:[#allocation2 + $0x8] sm:$0xff]
    %v44 = vld [vmem:[#allocation2 + $0x10] sm:$0xff]
    %v45 = vld [vmem:[#allocation2 + $0x18] sm:$0xff]
    %v46 = vld [vmem:[#allocation2 + $0x20] sm:$0xff]
    %v47 = vld [vmem:[#allocation2 + $0x28] sm:$0xff]
    %v48 = vld [vmem:[#allocation2 + $0x30] sm:$0xff]
    %v49 = vld [vmem:[#allocation2 + $0x38] sm:$0xff]
    %v50 = vld [vmem:[#allocation2 + $0x40] sm:$0xff]
    %v51 = vld [vmem:[#allocation2 + $0x48] sm:$0xff]
    %v52 = vld [vmem:[#allocation2 + $0x50] sm:$0xff]
    %v53 = vld [vmem:[#allocation2 + $0x58] sm:$0xff]
    %v54 = vld [vmem:[#allocation2 + $0x60] sm:$0xff]
    %v55 = vld [vmem:[#allocation2 + $0x68] sm:$0xff]
    %v56 = vld [vmem:[#allocation2 + $0x70] sm:$0xff]
    %v57 = vld [vmem:[#allocation2 + $0x78] sm:$0xff]
    %v58 = vld [vmem:[#allocation2 + $0x80] sm:$0xff]
    %v59 = vld [vmem:[#allocation2 + $0x88] sm:$0xff]
    %v60 = vld [vmem:[#allocation2 + $0x90] sm:$0xff]
    %v61 = vld [vmem:[#allocation2 + $0x98] sm:$0xff]
    %v62 = vld [vmem:[#allocation2 + $0xa0] sm:$0xff]
    %v63 = vld [vmem:[#allocation2 + $0xa8] sm:$0xff]
    %v64 = vld [vmem:[#allocation2 + $0xb0] sm:$0xff]
    %v65 = vld [vmem:[#allocation2 + $0xb8] sm:$0xff]
    %v66 = vld [vmem:[#allocation2 + $0xc0] sm:$0xff]
    %v67 = vld [vmem:[#allocation2 + $0xc8] sm:$0xff]
    %v68 = vld [vmem:[#allocation2 + $0xd0] sm:$0xff]
    %v69 = vld [vmem:[#allocation2 + $0xd8] sm:$0xff]
    %v70 = vld [vmem:[#allocation2 + $0xe0] sm:$0xff]
    %v71 = vld [vmem:[#allocation2 + $0xe8] sm:$0xff]
    %v72 = vld [vmem:[#allocation2 + $0xf0] sm:$0xff]
    %v73 = vld [vmem:[#allocation2 + $0xf8] sm:$0xff]
    %v74 = vpack.c.bf16 %v42, %v42
    %v75 = vpack.c.bf16 %v43, %v43
    %v76 = vpack.c.bf16 %v44, %v44
    %v77 = vpack.c.bf16 %v45, %v45
    %v78 = vpack.c.bf16 %v46, %v46
    %v79 = vpack.c.bf16 %v47, %v47
    %v80 = vpack.c.bf16 %v48, %v48
    %v81 = vpack.c.bf16 %v49, %v49
    %v82 = vpack.c.bf16 %v50, %v50
    %v83 = vpack.c.bf16 %v51, %v51
    %v84 = vpack.c.bf16 %v52, %v52
    %v85 = vpack.c.bf16 %v53, %v53
    %v86 = vpack.c.bf16 %v54, %v54
    %v87 = vpack.c.bf16 %v55, %v55
    %v88 = vpack.c.bf16 %v56, %v56
    %v89 = vpack.c.bf16 %v57, %v57
    %v90 = vpack.c.bf16 %v58, %v58
    %v91 = vpack.c.bf16 %v59, %v59
    %v92 = vpack.c.bf16 %v60, %v60
    %v93 = vpack.c.bf16 %v61, %v61
    %v94 = vpack.c.bf16 %v62, %v62
    %v95 = vpack.c.bf16 %v63, %v63
    %v96 = vpack.c.bf16 %v64, %v64
    %v97 = vpack.c.bf16 %v65, %v65
    %v98 = vpack.c.bf16 %v66, %v66
    %v99 = vpack.c.bf16 %v67, %v67
    %v100 = vpack.c.bf16 %v68, %v68
    %v101 = vpack.c.bf16 %v69, %v69
    %v102 = vpack.c.bf16 %v70, %v70
    %v103 = vpack.c.bf16 %v71, %v71
    %v104 = vpack.c.bf16 %v72, %v72
    %v105 = vpack.c.bf16 %v73, %v73
    %v106 = vld [vmem:[#allocation5] sm:$0xff]
    %v107 = vld [vmem:[#allocation5 + $0x8] sm:$0xff]
    %v108 = vld [vmem:[#allocation5 + $0x10] sm:$0xff]
    %v109 = vld [vmem:[#allocation5 + $0x18] sm:$0xff]
    %v110 = vld [vmem:[#allocation5 + $0x20] sm:$0xff]
    %v111 = vld [vmem:[#allocation5 + $0x28] sm:$0xff]
    %v112 = vld [vmem:[#allocation5 + $0x30] sm:$0xff]
    %v113 = vld [vmem:[#allocation5 + $0x38] sm:$0xff]
    %v114 = vld [vmem:[#allocation5 + $0x40] sm:$0xff]
    %v115 = vld [vmem:[#allocation5 + $0x48] sm:$0xff]
    %v116 = vld [vmem:[#allocation5 + $0x50] sm:$0xff]
    %v117 = vld [vmem:[#allocation5 + $0x58] sm:$0xff]
    %v118 = vld [vmem:[#allocation5 + $0x60] sm:$0xff]
    %v119 = vld [vmem:[#allocation5 + $0x68] sm:$0xff]
    %v120 = vld [vmem:[#allocation5 + $0x70] sm:$0xff]
    %v121 = vld [vmem:[#allocation5 + $0x78] sm:$0xff]
    %v122 = vld [vmem:[#allocation5 + $0x80] sm:$0xff]
    %v123 = vld [vmem:[#allocation5 + $0x88] sm:$0xff]
    %v124 = vld [vmem:[#allocation5 + $0x90] sm:$0xff]
    %v125 = vld [vmem:[#allocation5 + $0x98] sm:$0xff]
    %v126 = vld [vmem:[#allocation5 + $0xa0] sm:$0xff]
    %v127 = vld [vmem:[#allocation5 + $0xa8] sm:$0xff]
    %v128 = vld [vmem:[#allocation5 + $0xb0] sm:$0xff]
    %v129 = vld [vmem:[#allocation5 + $0xb8] sm:$0xff]
    %v130 = vld [vmem:[#allocation5 + $0xc0] sm:$0xff]
    %v131 = vld [vmem:[#allocation5 + $0xc8] sm:$0xff]
    %v132 = vld [vmem:[#allocation5 + $0xd0] sm:$0xff]
    %v133 = vld [vmem:[#allocation5 + $0xd8] sm:$0xff]
    %v134 = vld [vmem:[#allocation5 + $0xe0] sm:$0xff]
    %v135 = vld [vmem:[#allocation5 + $0xe8] sm:$0xff]
    %v136 = vld [vmem:[#allocation5 + $0xf0] sm:$0xff]
    %v137 = vld [vmem:[#allocation5 + $0xf8] sm:$0xff]
    %v138 = vld [vmem:[%s2] sm:$0x1]
    %v140 = vlaneseq
    %v141 = vshrl.u32 %v140, 7
    %v142 = vsub.s32 0, %v141
    %v143 = vrot.slane %v138, %v142
    %v177 = vunpack.c.l.b16 %v106
    %v178 = vunpack.c.h.b16 %v106
    %v179 = vunpack.c.l.b16 %v107
    %v180 = vunpack.c.h.b16 %v107
    %v181 = vunpack.c.l.b16 %v108
    %v182 = vunpack.c.h.b16 %v108
    %v183 = vunpack.c.l.b16 %v109
    %v184 = vunpack.c.h.b16 %v109
    %v185 = vunpack.c.l.b16 %v110
    %v186 = vunpack.c.h.b16 %v110
    %v187 = vunpack.c.l.b16 %v111
    %v188 = vunpack.c.h.b16 %v111
    %v189 = vunpack.c.l.b16 %v112
    %v190 = vunpack.c.h.b16 %v112
    %v191 = vunpack.c.l.b16 %v113
    %v192 = vunpack.c.h.b16 %v113
    %v193 = vunpack.c.l.b16 %v114
    %v194 = vunpack.c.h.b16 %v114
    %v195 = vunpack.c.l.b16 %v115
    %v196 = vunpack.c.h.b16 %v115
    %v197 = vunpack.c.l.b16 %v116
    %v198 = vunpack.c.h.b16 %v116
    %v199 = vunpack.c.l.b16 %v117
    %v200 = vunpack.c.h.b16 %v117
    %v201 = vunpack.c.l.b16 %v118
    %v202 = vunpack.c.h.b16 %v118
    %v203 = vunpack.c.l.b16 %v119
    %v204 = vunpack.c.h.b16 %v119
    %v205 = vunpack.c.l.b16 %v120
    %v206 = vunpack.c.h.b16 %v120
    %v207 = vunpack.c.l.b16 %v121
    %v208 = vunpack.c.h.b16 %v121
    %v209 = vunpack.c.l.b16 %v122
    %v210 = vunpack.c.h.b16 %v122
    %v211 = vunpack.c.l.b16 %v123
    %v212 = vunpack.c.h.b16 %v123
    %v213 = vunpack.c.l.b16 %v124
    %v214 = vunpack.c.h.b16 %v124
    %v215 = vunpack.c.l.b16 %v125
    %v216 = vunpack.c.h.b16 %v125
    %v217 = vunpack.c.l.b16 %v126
    %v218 = vunpack.c.h.b16 %v126
    %v219 = vunpack.c.l.b16 %v127
    %v220 = vunpack.c.h.b16 %v127
    %v221 = vunpack.c.l.b16 %v128
    %v222 = vunpack.c.h.b16 %v128
    %v223 = vunpack.c.l.b16 %v129
    %v224 = vunpack.c.h.b16 %v129
    %v225 = vunpack.c.l.b16 %v130
    %v226 = vunpack.c.h.b16 %v130
    %v227 = vunpack.c.l.b16 %v131
    %v228 = vunpack.c.h.b16 %v131
    %v229 = vunpack.c.l.b16 %v132
    %v230 = vunpack.c.h.b16 %v132
    %v231 = vunpack.c.l.b16 %v133
    %v232 = vunpack.c.h.b16 %v133
    %v233 = vunpack.c.l.b16 %v134
    %v234 = vunpack.c.h.b16 %v134
    %v235 = vunpack.c.l.b16 %v135
    %v236 = vunpack.c.h.b16 %v135
    %v237 = vunpack.c.l.b16 %v136
    %v238 = vunpack.c.h.b16 %v136
    %v239 = vunpack.c.l.b16 %v137
    %v240 = vunpack.c.h.b16 %v137
    %v241 = vpack.c.b16 %v209, %v177
    %v242 = vpack.c.b16 %v210, %v178
    %v243 = vpack.c.b16 %v211, %v179
    %v244 = vpack.c.b16 %v212, %v180
    %v245 = vpack.c.b16 %v213, %v181
    %v246 = vpack.c.b16 %v214, %v182
    %v247 = vpack.c.b16 %v215, %v183
    %v248 = vpack.c.b16 %v216, %v184
    %v249 = vpack.c.b16 %v217, %v185
    %v250 = vpack.c.b16 %v218, %v186
    %v251 = vpack.c.b16 %v219, %v187
    %v252 = vpack.c.b16 %v220, %v188
    %v253 = vpack.c.b16 %v221, %v189
    %v254 = vpack.c.b16 %v222, %v190
    %v255 = vpack.c.b16 %v223, %v191
    %v256 = vpack.c.b16 %v224, %v192
    %v257 = vpack.c.b16 %v225, %v193
    %v258 = vpack.c.b16 %v226, %v194
    %v259 = vpack.c.b16 %v227, %v195
    %v260 = vpack.c.b16 %v228, %v196
    %v261 = vpack.c.b16 %v229, %v197
    %v262 = vpack.c.b16 %v230, %v198
    %v263 = vpack.c.b16 %v231, %v199
    %v264 = vpack.c.b16 %v232, %v200
    %v265 = vpack.c.b16 %v233, %v201
    %v266 = vpack.c.b16 %v234, %v202
    %v267 = vpack.c.b16 %v235, %v203
    %v268 = vpack.c.b16 %v236, %v204
    %v269 = vpack.c.b16 %v237, %v205
    %v270 = vpack.c.b16 %v238, %v206
    %v271 = vpack.c.b16 %v239, %v207
    %v272 = vpack.c.b16 %v240, %v208
    %305 = vmatprep.subr.bf16.mxu0 %v242
    %306 = vmatpush1.bf16.xpose.msra.mxu0 %v241
    %307 = vmatprep.subr.bf16.mxu0 0
    %308 = vmatpush1.bf16.xpose.msra.mxu0 0
    %309 = vmatprep.subr.bf16.mxu0 0
    %310 = vmatpush1.bf16.xpose.msra.mxu0 0
    %311 = vmatprep.subr.bf16.mxu0 0
    %312 = vmatpush1.bf16.xpose.msra.mxu0 0
    %313 = vmatprep.subr.bf16.mxu0 0
    %314 = vmatpush1.bf16.xpose.msra.mxu0 0
    %315 = vmatprep.subr.bf16.mxu0 0
    %316 = vmatpush1.bf16.xpose.msra.mxu0 0
    %317 = vmatprep.subr.bf16.mxu0 0
    %318 = vmatpush1.bf16.xpose.msra.mxu0 0
    %319 = vmatprep.subr.bf16.mxu0 0
    %320 = vmatpush1.bf16.xpose.msra.mxu0 0
    %321 = vmatprep.subr.bf16.mxu0 0
    %322 = vmatpush1.bf16.xpose.msra.mxu0 0
    %323 = vmatprep.subr.bf16.mxu0 0
    %324 = vmatpush1.bf16.xpose.msra.mxu0 0
    %325 = vmatprep.subr.bf16.mxu0 0
    %326 = vmatpush1.bf16.xpose.msra.mxu0 0
    %327 = vmatprep.subr.bf16.mxu0 0
    %328 = vmatpush1.bf16.xpose.msra.mxu0 0
    %329 = vmatprep.subr.bf16.mxu0 0
    %330 = vmatpush1.bf16.xpose.msra.mxu0 0
    %331 = vmatprep.subr.bf16.mxu0 0
    %332 = vmatpush1.bf16.xpose.msra.mxu0 0
    %333 = vmatprep.subr.bf16.mxu0 0
    %334 = vmatpush1.bf16.xpose.msra.mxu0 0
    %335 = vmatprep.subr.bf16.mxu0 0
    %336 = vmatpush1.bf16.xpose.msra.mxu0 0
    %337 = vmatprep.mubr.bf16.mxu0 %v75
    %338 = vmatmul.mubr.bf16.gmra.mrb[0].mxu0 %v74
    %v339 = vpop.f32.mrb[0].mxu0
    %v340 = vadd.f32 %v143, %v339
    %v341 = vpop.f32.mrb[0].mxu0
    %v342 = vpop.f32.mrb[0].mxu0
    %v343 = vpop.f32.mrb[0].mxu0
    %344 = vdwg.mxu0
    %345 = vmatprep.subr.bf16.mxu0 %v244
    %346 = vmatpush1.bf16.xpose.msra.mxu0 %v243
    %347 = vmatprep.subr.bf16.mxu0 0
    %348 = vmatpush1.bf16.xpose.msra.mxu0 0
    %349 = vmatprep.subr.bf16.mxu0 0
    %350 = vmatpush1.bf16.xpose.msra.mxu0 0
    %351 = vmatprep.subr.bf16.mxu0 0
    %352 = vmatpush1.bf16.xpose.msra.mxu0 0
    %353 = vmatprep.subr.bf16.mxu0 0
    %354 = vmatpush1.bf16.xpose.msra.mxu0 0
    %355 = vmatprep.subr.bf16.mxu0 0
    %356 = vmatpush1.bf16.xpose.msra.mxu0 0
    %357 = vmatprep.subr.bf16.mxu0 0
    %358 = vmatpush1.bf16.xpose.msra.mxu0 0
    %359 = vmatprep.subr.bf16.mxu0 0
    %360 = vmatpush1.bf16.xpose.msra.mxu0 0
    %361 = vmatprep.subr.bf16.mxu0 0
    %362 = vmatpush1.bf16.xpose.msra.mxu0 0
    %363 = vmatprep.subr.bf16.mxu0 0
    %364 = vmatpush1.bf16.xpose.msra.mxu0 0
    %365 = vmatprep.subr.bf16.mxu0 0
    %366 = vmatpush1.bf16.xpose.msra.mxu0 0
    %367 = vmatprep.subr.bf16.mxu0 0
    %368 = vmatpush1.bf16.xpose.msra.mxu0 0
    %369 = vmatprep.subr.bf16.mxu0 0
    %370 = vmatpush1.bf16.xpose.msra.mxu0 0
    %371 = vmatprep.subr.bf16.mxu0 0
    %372 = vmatpush1.bf16.xpose.msra.mxu0 0
    %373 = vmatprep.subr.bf16.mxu0 0
    %374 = vmatpush1.bf16.xpose.msra.mxu0 0
    %375 = vmatprep.subr.bf16.mxu0 0
    %376 = vmatpush1.bf16.xpose.msra.mxu0 0
    %377 = vmatprep.mubr.bf16.mxu0 %v77
    %378 = vmatmul.mubr.bf16.gmra.mrb[0].mxu0 %v76
    %v379 = vpop.f32.mrb[0].mxu0
    %v380 = vadd.f32 %v340, %v379
    %v381 = vpop.f32.mrb[0].mxu0
    %v382 = vpop.f32.mrb[0].mxu0
    %v383 = vpop.f32.mrb[0].mxu0
    %384 = vdwg.mxu0
    %385 = vmatprep.subr.bf16.mxu0 %v246
    %386 = vmatpush1.bf16.xpose.msra.mxu0 %v245
    %387 = vmatprep.subr.bf16.mxu0 0
    %388 = vmatpush1.bf16.xpose.msra.mxu0 0
    %389 = vmatprep.subr.bf16.mxu0 0
    %390 = vmatpush1.bf16.xpose.msra.mxu0 0
    %391 = vmatprep.subr.bf16.mxu0 0
    %392 = vmatpush1.bf16.xpose.msra.mxu0 0
    %393 = vmatprep.subr.bf16.mxu0 0
    %394 = vmatpush1.bf16.xpose.msra.mxu0 0
    %395 = vmatprep.subr.bf16.mxu0 0
    %396 = vmatpush1.bf16.xpose.msra.mxu0 0
    %397 = vmatprep.subr.bf16.mxu0 0
    %398 = vmatpush1.bf16.xpose.msra.mxu0 0
    %399 = vmatprep.subr.bf16.mxu0 0
    %400 = vmatpush1.bf16.xpose.msra.mxu0 0
    %401 = vmatprep.subr.bf16.mxu0 0
    %402 = vmatpush1.bf16.xpose.msra.mxu0 0
    %403 = vmatprep.subr.bf16.mxu0 0
    %404 = vmatpush1.bf16.xpose.msra.mxu0 0
    %405 = vmatprep.subr.bf16.mxu0 0
    %406 = vmatpush1.bf16.xpose.msra.mxu0 0
    %407 = vmatprep.subr.bf16.mxu0 0
    %408 = vmatpush1.bf16.xpose.msra.mxu0 0
    %409 = vmatprep.subr.bf16.mxu0 0
    %410 = vmatpush1.bf16.xpose.msra.mxu0 0
    %411 = vmatprep.subr.bf16.mxu0 0
    %412 = vmatpush1.bf16.xpose.msra.mxu0 0
    %413 = vmatprep.subr.bf16.mxu0 0
    %414 = vmatpush1.bf16.xpose.msra.mxu0 0
    %415 = vmatprep.subr.bf16.mxu0 0
    %416 = vmatpush1.bf16.xpose.msra.mxu0 0
    %417 = vmatprep.mubr.bf16.mxu0 %v79
    %418 = vmatmul.mubr.bf16.gmra.mrb[0].mxu0 %v78
    %v419 = vpop.f32.mrb[0].mxu0
    %v420 = vadd.f32 %v380, %v419
    %v421 = vpop.f32.mrb[0].mxu0
    %v422 = vpop.f32.mrb[0].mxu0
    %v423 = vpop.f32.mrb[0].mxu0
    %424 = vdwg.mxu0
    %425 = vmatprep.subr.bf16.mxu0 %v248
    %426 = vmatpush1.bf16.xpose.msra.mxu0 %v247
    %427 = vmatprep.subr.bf16.mxu0 0
    %428 = vmatpush1.bf16.xpose.msra.mxu0 0
    %429 = vmatprep.subr.bf16.mxu0 0
    %430 = vmatpush1.bf16.xpose.msra.mxu0 0
    %431 = vmatprep.subr.bf16.mxu0 0
    %432 = vmatpush1.bf16.xpose.msra.mxu0 0
    %433 = vmatprep.subr.bf16.mxu0 0
    %434 = vmatpush1.bf16.xpose.msra.mxu0 0
    %435 = vmatprep.subr.bf16.mxu0 0
    %436 = vmatpush1.bf16.xpose.msra.mxu0 0
    %437 = vmatprep.subr.bf16.mxu0 0
    %438 = vmatpush1.bf16.xpose.msra.mxu0 0
    %439 = vmatprep.subr.bf16.mxu0 0
    %440 = vmatpush1.bf16.xpose.msra.mxu0 0
    %441 = vmatprep.subr.bf16.mxu0 0
    %442 = vmatpush1.bf16.xpose.msra.mxu0 0
    %443 = vmatprep.subr.bf16.mxu0 0
    %444 = vmatpush1.bf16.xpose.msra.mxu0 0
    %445 = vmatprep.subr.bf16.mxu0 0
    %446 = vmatpush1.bf16.xpose.msra.mxu0 0
    %447 = vmatprep.subr.bf16.mxu0 0
    %448 = vmatpush1.bf16.xpose.msra.mxu0 0
    %449 = vmatprep.subr.bf16.mxu0 0
    %450 = vmatpush1.bf16.xpose.msra.mxu0 0
    %451 = vmatprep.subr.bf16.mxu0 0
    %452 = vmatpush1.bf16.xpose.msra.mxu0 0
    %453 = vmatprep.subr.bf16.mxu0 0
    %454 = vmatpush1.bf16.xpose.msra.mxu0 0
    %455 = vmatprep.subr.bf16.mxu0 0
    %456 = vmatpush1.bf16.xpose.msra.mxu0 0
    %457 = vmatprep.mubr.bf16.mxu0 %v81
    %458 = vmatmul.mubr.bf16.gmra.mrb[0].mxu0 %v80
    %v459 = vpop.f32.mrb[0].mxu0
    %v460 = vadd.f32 %v420, %v459
    %v461 = vpop.f32.mrb[0].mxu0
    %v462 = vpop.f32.mrb[0].mxu0
    %v463 = vpop.f32.mrb[0].mxu0
    %464 = vdwg.mxu0
    %465 = vmatprep.subr.bf16.mxu0 %v250
    %466 = vmatpush1.bf16.xpose.msra.mxu0 %v249
    %467 = vmatprep.subr.bf16.mxu0 0
    %468 = vmatpush1.bf16.xpose.msra.mxu0 0
    %469 = vmatprep.subr.bf16.mxu0 0
    %470 = vmatpush1.bf16.xpose.msra.mxu0 0
    %471 = vmatprep.subr.bf16.mxu0 0
    %472 = vmatpush1.bf16.xpose.msra.mxu0 0
    %473 = vmatprep.subr.bf16.mxu0 0
    %474 = vmatpush1.bf16.xpose.msra.mxu0 0
    %475 = vmatprep.subr.bf16.mxu0 0
    %476 = vmatpush1.bf16.xpose.msra.mxu0 0
    %477 = vmatprep.subr.bf16.mxu0 0
    %478 = vmatpush1.bf16.xpose.msra.mxu0 0
    %479 = vmatprep.subr.bf16.mxu0 0
    %480 = vmatpush1.bf16.xpose.msra.mxu0 0
    %481 = vmatprep.subr.bf16.mxu0 0
    %482 = vmatpush1.bf16.xpose.msra.mxu0 0
    %483 = vmatprep.subr.bf16.mxu0 0
    %484 = vmatpush1.bf16.xpose.msra.mxu0 0
    %485 = vmatprep.subr.bf16.mxu0 0
    %486 = vmatpush1.bf16.xpose.msra.mxu0 0
    %487 = vmatprep.subr.bf16.mxu0 0
    %488 = vmatpush1.bf16.xpose.msra.mxu0 0
    %489 = vmatprep.subr.bf16.mxu0 0
    %490 = vmatpush1.bf16.xpose.msra.mxu0 0
    %491 = vmatprep.subr.bf16.mxu0 0
    %492 = vmatpush1.bf16.xpose.msra.mxu0 0
    %493 = vmatprep.subr.bf16.mxu0 0
    %494 = vmatpush1.bf16.xpose.msra.mxu0 0
    %495 = vmatprep.subr.bf16.mxu0 0
    %496 = vmatpush1.bf16.xpose.msra.mxu0 0
    %497 = vmatprep.mubr.bf16.mxu0 %v83
    %498 = vmatmul.mubr.bf16.gmra.mrb[0].mxu0 %v82
    %v499 = vpop.f32.mrb[0].mxu0
    %v500 = vadd.f32 %v460, %v499
    %v501 = vpop.f32.mrb[0].mxu0
    %v502 = vpop.f32.mrb[0].mxu0
    %v503 = vpop.f32.mrb[0].mxu0
    %504 = vdwg.mxu0
    %505 = vmatprep.subr.bf16.mxu0 %v252
    %506 = vmatpush1.bf16.xpose.msra.mxu0 %v251
    %507 = vmatprep.subr.bf16.mxu0 0
    %508 = vmatpush1.bf16.xpose.msra.mxu0 0
    %509 = vmatprep.subr.bf16.mxu0 0
    %510 = vmatpush1.bf16.xpose.msra.mxu0 0
    %511 = vmatprep.subr.bf16.mxu0 0
    %512 = vmatpush1.bf16.xpose.msra.mxu0 0
    %513 = vmatprep.subr.bf16.mxu0 0
    %514 = vmatpush1.bf16.xpose.msra.mxu0 0
    %515 = vmatprep.subr.bf16.mxu0 0
    %516 = vmatpush1.bf16.xpose.msra.mxu0 0
    %517 = vmatprep.subr.bf16.mxu0 0
    %518 = vmatpush1.bf16.xpose.msra.mxu0 0
    %519 = vmatprep.subr.bf16.mxu0 0
    %520 = vmatpush1.bf16.xpose.msra.mxu0 0
    %521 = vmatprep.subr.bf16.mxu0 0
    %522 = vmatpush1.bf16.xpose.msra.mxu0 0
    %523 = vmatprep.subr.bf16.mxu0 0
    %524 = vmatpush1.bf16.xpose.msra.mxu0 0
    %525 = vmatprep.subr.bf16.mxu0 0
    %526 = vmatpush1.bf16.xpose.msra.mxu0 0
    %527 = vmatprep.subr.bf16.mxu0 0
    %528 = vmatpush1.bf16.xpose.msra.mxu0 0
    %529 = vmatprep.subr.bf16.mxu0 0
    %530 = vmatpush1.bf16.xpose.msra.mxu0 0
    %531 = vmatprep.subr.bf16.mxu0 0
    %532 = vmatpush1.bf16.xpose.msra.mxu0 0
    %533 = vmatprep.subr.bf16.mxu0 0
    %534 = vmatpush1.bf16.xpose.msra.mxu0 0
    %535 = vmatprep.subr.bf16.mxu0 0
    %536 = vmatpush1.bf16.xpose.msra.mxu0 0
    %537 = vmatprep.mubr.bf16.mxu0 %v85
    %538 = vmatmul.mubr.bf16.gmra.mrb[0].mxu0 %v84
    %v539 = vpop.f32.mrb[0].mxu0
    %v540 = vadd.f32 %v500, %v539
    %v541 = vpop.f32.mrb[0].mxu0
    %v542 = vpop.f32.mrb[0].mxu0
    %v543 = vpop.f32.mrb[0].mxu0
    %544 = vdwg.mxu0
    %545 = vmatprep.subr.bf16.mxu0 %v254
    %546 = vmatpush1.bf16.xpose.msra.mxu0 %v253
    %547 = vmatprep.subr.bf16.mxu0 0
    %548 = vmatpush1.bf16.xpose.msra.mxu0 0
    %549 = vmatprep.subr.bf16.mxu0 0
    %550 = vmatpush1.bf16.xpose.msra.mxu0 0
    %551 = vmatprep.subr.bf16.mxu0 0
    %552 = vmatpush1.bf16.xpose.msra.mxu0 0
    %553 = vmatprep.subr.bf16.mxu0 0
    %554 = vmatpush1.bf16.xpose.msra.mxu0 0
    %555 = vmatprep.subr.bf16.mxu0 0
    %556 = vmatpush1.bf16.xpose.msra.mxu0 0
    %557 = vmatprep.subr.bf16.mxu0 0
    %558 = vmatpush1.bf16.xpose.msra.mxu0 0
    %559 = vmatprep.subr.bf16.mxu0 0
    %560 = vmatpush1.bf16.xpose.msra.mxu0 0
    %561 = vmatprep.subr.bf16.mxu0 0
    %562 = vmatpush1.bf16.xpose.msra.mxu0 0
    %563 = vmatprep.subr.bf16.mxu0 0
    %564 = vmatpush1.bf16.xpose.msra.mxu0 0
    %565 = vmatprep.subr.bf16.mxu0 0
    %566 = vmatpush1.bf16.xpose.msra.mxu0 0
    %567 = vmatprep.subr.bf16.mxu0 0
    %568 = vmatpush1.bf16.xpose.msra.mxu0 0
    %569 = vmatprep.subr.bf16.mxu0 0
    %570 = vmatpush1.bf16.xpose.msra.mxu0 0
    %571 = vmatprep.subr.bf16.mxu0 0
    %572 = vmatpush1.bf16.xpose.msra.mxu0 0
    %573 = vmatprep.subr.bf16.mxu0 0
    %574 = vmatpush1.bf16.xpose.msra.mxu0 0
    %575 = vmatprep.subr.bf16.mxu0 0
    %576 = vmatpush1.bf16.xpose.msra.mxu0 0
    %577 = vmatprep.mubr.bf16.mxu0 %v87
    %578 = vmatmul.mubr.bf16.gmra.mrb[0].mxu0 %v86
    %v579 = vpop.f32.mrb[0].mxu0
    %v580 = vadd.f32 %v540, %v579
    %v581 = vpop.f32.mrb[0].mxu0
    %v582 = vpop.f32.mrb[0].mxu0
    %v583 = vpop.f32.mrb[0].mxu0
    %584 = vdwg.mxu0
    %585 = vmatprep.subr.bf16.mxu0 %v256
    %586 = vmatpush1.bf16.xpose.msra.mxu0 %v255
    %587 = vmatprep.subr.bf16.mxu0 0
    %588 = vmatpush1.bf16.xpose.msra.mxu0 0
    %589 = vmatprep.subr.bf16.mxu0 0
    %590 = vmatpush1.bf16.xpose.msra.mxu0 0
    %591 = vmatprep.subr.bf16.mxu0 0
    %592 = vmatpush1.bf16.xpose.msra.mxu0 0
    %593 = vmatprep.subr.bf16.mxu0 0
    %594 = vmatpush1.bf16.xpose.msra.mxu0 0
    %595 = vmatprep.subr.bf16.mxu0 0
    %596 = vmatpush1.bf16.xpose.msra.mxu0 0
    %597 = vmatprep.subr.bf16.mxu0 0
    %598 = vmatpush1.bf16.xpose.msra.mxu0 0
    %599 = vmatprep.subr.bf16.mxu0 0
    %600 = vmatpush1.bf16.xpose.msra.mxu0 0
    %601 = vmatprep.subr.bf16.mxu0 0
    %602 = vmatpush1.bf16.xpose.msra.mxu0 0
    %603 = vmatprep.subr.bf16.mxu0 0
    %604 = vmatpush1.bf16.xpose.msra.mxu0 0
    %605 = vmatprep.subr.bf16.mxu0 0
    %606 = vmatpush1.bf16.xpose.msra.mxu0 0
    %607 = vmatprep.subr.bf16.mxu0 0
    %608 = vmatpush1.bf16.xpose.msra.mxu0 0
    %609 = vmatprep.subr.bf16.mxu0 0
    %610 = vmatpush1.bf16.xpose.msra.mxu0 0
    %611 = vmatprep.subr.bf16.mxu0 0
    %612 = vmatpush1.bf16.xpose.msra.mxu0 0
    %613 = vmatprep.subr.bf16.mxu0 0
    %614 = vmatpush1.bf16.xpose.msra.mxu0 0
    %615 = vmatprep.subr.bf16.mxu0 0
    %616 = vmatpush1.bf16.xpose.msra.mxu0 0
    %617 = vmatprep.mubr.bf16.mxu0 %v89
    %618 = vmatmul.mubr.bf16.gmra.mrb[0].mxu0 %v88
    %v619 = vpop.f32.mrb[0].mxu0
    %v620 = vadd.f32 %v580, %v619
    %v621 = vpop.f32.mrb[0].mxu0
    %v622 = vpop.f32.mrb[0].mxu0
    %v623 = vpop.f32.mrb[0].mxu0
    %624 = vdwg.mxu0
    %625 = vmatprep.subr.bf16.mxu0 %v258
    %626 = vmatpush1.bf16.xpose.msra.mxu0 %v257
    %627 = vmatprep.subr.bf16.mxu0 0
    %628 = vmatpush1.bf16.xpose.msra.mxu0 0
    %629 = vmatprep.subr.bf16.mxu0 0
    %630 = vmatpush1.bf16.xpose.msra.mxu0 0
    %631 = vmatprep.subr.bf16.mxu0 0
    %632 = vmatpush1.bf16.xpose.msra.mxu0 0
    %633 = vmatprep.subr.bf16.mxu0 0
    %634 = vmatpush1.bf16.xpose.msra.mxu0 0
    %635 = vmatprep.subr.bf16.mxu0 0
    %636 = vmatpush1.bf16.xpose.msra.mxu0 0
    %637 = vmatprep.subr.bf16.mxu0 0
    %638 = vmatpush1.bf16.xpose.msra.mxu0 0
    %639 = vmatprep.subr.bf16.mxu0 0
    %640 = vmatpush1.bf16.xpose.msra.mxu0 0
    %641 = vmatprep.subr.bf16.mxu0 0
    %642 = vmatpush1.bf16.xpose.msra.mxu0 0
    %643 = vmatprep.subr.bf16.mxu0 0
    %644 = vmatpush1.bf16.xpose.msra.mxu0 0
    %645 = vmatprep.subr.bf16.mxu0 0
    %646 = vmatpush1.bf16.xpose.msra.mxu0 0
    %647 = vmatprep.subr.bf16.mxu0 0
    %648 = vmatpush1.bf16.xpose.msra.mxu0 0
    %649 = vmatprep.subr.bf16.mxu0 0
    %650 = vmatpush1.bf16.xpose.msra.mxu0 0
    %651 = vmatprep.subr.bf16.mxu0 0
    %652 = vmatpush1.bf16.xpose.msra.mxu0 0
    %653 = vmatprep.subr.bf16.mxu0 0
    %654 = vmatpush1.bf16.xpose.msra.mxu0 0
    %655 = vmatprep.subr.bf16.mxu0 0
    %656 = vmatpush1.bf16.xpose.msra.mxu0 0
    %657 = vmatprep.mubr.bf16.mxu0 %v91
    %658 = vmatmul.mubr.bf16.gmra.mrb[0].mxu0 %v90
    %v659 = vpop.f32.mrb[0].mxu0
    %v660 = vadd.f32 %v620, %v659
    %v661 = vpop.f32.mrb[0].mxu0
    %v662 = vpop.f32.mrb[0].mxu0
    %v663 = vpop.f32.mrb[0].mxu0
    %664 = vdwg.mxu0
    %665 = vmatprep.subr.bf16.mxu0 %v260
    %666 = vmatpush1.bf16.xpose.msra.mxu0 %v259
    %667 = vmatprep.subr.bf16.mxu0 0
    %668 = vmatpush1.bf16.xpose.msra.mxu0 0
    %669 = vmatprep.subr.bf16.mxu0 0
    %670 = vmatpush1.bf16.xpose.msra.mxu0 0
    %671 = vmatprep.subr.bf16.mxu0 0
    %672 = vmatpush1.bf16.xpose.msra.mxu0 0
    %673 = vmatprep.subr.bf16.mxu0 0
    %674 = vmatpush1.bf16.xpose.msra.mxu0 0
    %675 = vmatprep.subr.bf16.mxu0 0
    %676 = vmatpush1.bf16.xpose.msra.mxu0 0
    %677 = vmatprep.subr.bf16.mxu0 0
    %678 = vmatpush1.bf16.xpose.msra.mxu0 0
    %679 = vmatprep.subr.bf16.mxu0 0
    %680 = vmatpush1.bf16.xpose.msra.mxu0 0
    %681 = vmatprep.subr.bf16.mxu0 0
    %682 = vmatpush1.bf16.xpose.msra.mxu0 0
    %683 = vmatprep.subr.bf16.mxu0 0
    %684 = vmatpush1.bf16.xpose.msra.mxu0 0
    %685 = vmatprep.subr.bf16.mxu0 0
    %686 = vmatpush1.bf16.xpose.msra.mxu0 0
    %687 = vmatprep.subr.bf16.mxu0 0
    %688 = vmatpush1.bf16.xpose.msra.mxu0 0
    %689 = vmatprep.subr.bf16.mxu0 0
    %690 = vmatpush1.bf16.xpose.msra.mxu0 0
    %691 = vmatprep.subr.bf16.mxu0 0
    %692 = vmatpush1.bf16.xpose.msra.mxu0 0
    %693 = vmatprep.subr.bf16.mxu0 0
    %694 = vmatpush1.bf16.xpose.msra.mxu0 0
    %695 = vmatprep.subr.bf16.mxu0 0
    %696 = vmatpush1.bf16.xpose.msra.mxu0 0
    %697 = vmatprep.mubr.bf16.mxu0 %v93
    %698 = vmatmul.mubr.bf16.gmra.mrb[0].mxu0 %v92
    %v699 = vpop.f32.mrb[0].mxu0
    %v700 = vadd.f32 %v660, %v699
    %v701 = vpop.f32.mrb[0].mxu0
    %v702 = vpop.f32.mrb[0].mxu0
    %v703 = vpop.f32.mrb[0].mxu0
    %704 = vdwg.mxu0
    %705 = vmatprep.subr.bf16.mxu0 %v262
    %706 = vmatpush1.bf16.xpose.msra.mxu0 %v261
    %707 = vmatprep.subr.bf16.mxu0 0
    %708 = vmatpush1.bf16.xpose.msra.mxu0 0
    %709 = vmatprep.subr.bf16.mxu0 0
    %710 = vmatpush1.bf16.xpose.msra.mxu0 0
    %711 = vmatprep.subr.bf16.mxu0 0
    %712 = vmatpush1.bf16.xpose.msra.mxu0 0
    %713 = vmatprep.subr.bf16.mxu0 0
    %714 = vmatpush1.bf16.xpose.msra.mxu0 0
    %715 = vmatprep.subr.bf16.mxu0 0
    %716 = vmatpush1.bf16.xpose.msra.mxu0 0
    %717 = vmatprep.subr.bf16.mxu0 0
    %718 = vmatpush1.bf16.xpose.msra.mxu0 0
    %719 = vmatprep.subr.bf16.mxu0 0
    %720 = vmatpush1.bf16.xpose.msra.mxu0 0
    %721 = vmatprep.subr.bf16.mxu0 0
    %722 = vmatpush1.bf16.xpose.msra.mxu0 0
    %723 = vmatprep.subr.bf16.mxu0 0
    %724 = vmatpush1.bf16.xpose.msra.mxu0 0
    %725 = vmatprep.subr.bf16.mxu0 0
    %726 = vmatpush1.bf16.xpose.msra.mxu0 0
    %727 = vmatprep.subr.bf16.mxu0 0
    %728 = vmatpush1.bf16.xpose.msra.mxu0 0
    %729 = vmatprep.subr.bf16.mxu0 0
    %730 = vmatpush1.bf16.xpose.msra.mxu0 0
    %731 = vmatprep.subr.bf16.mxu0 0
    %732 = vmatpush1.bf16.xpose.msra.mxu0 0
    %733 = vmatprep.subr.bf16.mxu0 0
    %734 = vmatpush1.bf16.xpose.msra.mxu0 0
    %735 = vmatprep.subr.bf16.mxu0 0
    %736 = vmatpush1.bf16.xpose.msra.mxu0 0
    %737 = vmatprep.mubr.bf16.mxu0 %v95
    %738 = vmatmul.mubr.bf16.gmra.mrb[0].mxu0 %v94
    %v739 = vpop.f32.mrb[0].mxu0
    %v740 = vadd.f32 %v700, %v739
    %v741 = vpop.f32.mrb[0].mxu0
    %v742 = vpop.f32.mrb[0].mxu0
    %v743 = vpop.f32.mrb[0].mxu0
    %744 = vdwg.mxu0
    %745 = vmatprep.subr.bf16.mxu0 %v264
    %746 = vmatpush1.bf16.xpose.msra.mxu0 %v263
    %747 = vmatprep.subr.bf16.mxu0 0
    %748 = vmatpush1.bf16.xpose.msra.mxu0 0
    %749 = vmatprep.subr.bf16.mxu0 0
    %750 = vmatpush1.bf16.xpose.msra.mxu0 0
    %751 = vmatprep.subr.bf16.mxu0 0
    %752 = vmatpush1.bf16.xpose.msra.mxu0 0
    %753 = vmatprep.subr.bf16.mxu0 0
    %754 = vmatpush1.bf16.xpose.msra.mxu0 0
    %755 = vmatprep.subr.bf16.mxu0 0
    %756 = vmatpush1.bf16.xpose.msra.mxu0 0
    %757 = vmatprep.subr.bf16.mxu0 0
    %758 = vmatpush1.bf16.xpose.msra.mxu0 0
    %759 = vmatprep.subr.bf16.mxu0 0
    %760 = vmatpush1.bf16.xpose.msra.mxu0 0
    %761 = vmatprep.subr.bf16.mxu0 0
    %762 = vmatpush1.bf16.xpose.msra.mxu0 0
    %763 = vmatprep.subr.bf16.mxu0 0
    %764 = vmatpush1.bf16.xpose.msra.mxu0 0
    %765 = vmatprep.subr.bf16.mxu0 0
    %766 = vmatpush1.bf16.xpose.msra.mxu0 0
    %767 = vmatprep.subr.bf16.mxu0 0
    %768 = vmatpush1.bf16.xpose.msra.mxu0 0
    %769 = vmatprep.subr.bf16.mxu0 0
    %770 = vmatpush1.bf16.xpose.msra.mxu0 0
    %771 = vmatprep.subr.bf16.mxu0 0
    %772 = vmatpush1.bf16.xpose.msra.mxu0 0
    %773 = vmatprep.subr.bf16.mxu0 0
    %774 = vmatpush1.bf16.xpose.msra.mxu0 0
    %775 = vmatprep.subr.bf16.mxu0 0
    %776 = vmatpush1.bf16.xpose.msra.mxu0 0
    %777 = vmatprep.mubr.bf16.mxu0 %v97
    %778 = vmatmul.mubr.bf16.gmra.mrb[0].mxu0 %v96
    %v779 = vpop.f32.mrb[0].mxu0
    %v780 = vadd.f32 %v740, %v779
    %v781 = vpop.f32.mrb[0].mxu0
    %v782 = vpop.f32.mrb[0].mxu0
    %v783 = vpop.f32.mrb[0].mxu0
    %784 = vdwg.mxu0
    %785 = vmatprep.subr.bf16.mxu0 %v266
    %786 = vmatpush1.bf16.xpose.msra.mxu0 %v265
    %787 = vmatprep.subr.bf16.mxu0 0
    %788 = vmatpush1.bf16.xpose.msra.mxu0 0
    %789 = vmatprep.subr.bf16.mxu0 0
    %790 = vmatpush1.bf16.xpose.msra.mxu0 0
    %791 = vmatprep.subr.bf16.mxu0 0
    %792 = vmatpush1.bf16.xpose.msra.mxu0 0
    %793 = vmatprep.subr.bf16.mxu0 0
    %794 = vmatpush1.bf16.xpose.msra.mxu0 0
    %795 = vmatprep.subr.bf16.mxu0 0
    %796 = vmatpush1.bf16.xpose.msra.mxu0 0
    %797 = vmatprep.subr.bf16.mxu0 0
    %798 = vmatpush1.bf16.xpose.msra.mxu0 0
    %799 = vmatprep.subr.bf16.mxu0 0
    %800 = vmatpush1.bf16.xpose.msra.mxu0 0
    %801 = vmatprep.subr.bf16.mxu0 0
    %802 = vmatpush1.bf16.xpose.msra.mxu0 0
    %803 = vmatprep.subr.bf16.mxu0 0
    %804 = vmatpush1.bf16.xpose.msra.mxu0 0
    %805 = vmatprep.subr.bf16.mxu0 0
    %806 = vmatpush1.bf16.xpose.msra.mxu0 0
    %807 = vmatprep.subr.bf16.mxu0 0
    %808 = vmatpush1.bf16.xpose.msra.mxu0 0
    %809 = vmatprep.subr.bf16.mxu0 0
    %810 = vmatpush1.bf16.xpose.msra.mxu0 0
    %811 = vmatprep.subr.bf16.mxu0 0
    %812 = vmatpush1.bf16.xpose.msra.mxu0 0
    %813 = vmatprep.subr.bf16.mxu0 0
    %814 = vmatpush1.bf16.xpose.msra.mxu0 0
    %815 = vmatprep.subr.bf16.mxu0 0
    %816 = vmatpush1.bf16.xpose.msra.mxu0 0
    %817 = vmatprep.mubr.bf16.mxu0 %v99
    %818 = vmatmul.mubr.bf16.gmra.mrb[0].mxu0 %v98
    %v819 = vpop.f32.mrb[0].mxu0
    %v820 = vadd.f32 %v780, %v819
    %v821 = vpop.f32.mrb[0].mxu0
    %v822 = vpop.f32.mrb[0].mxu0
    %v823 = vpop.f32.mrb[0].mxu0
    %824 = vdwg.mxu0
    %825 = vmatprep.subr.bf16.mxu0 %v268
    %826 = vmatpush1.bf16.xpose.msra.mxu0 %v267
    %827 = vmatprep.subr.bf16.mxu0 0
    %828 = vmatpush1.bf16.xpose.msra.mxu0 0
    %829 = vmatprep.subr.bf16.mxu0 0
    %830 = vmatpush1.bf16.xpose.msra.mxu0 0
    %831 = vmatprep.subr.bf16.mxu0 0
    %832 = vmatpush1.bf16.xpose.msra.mxu0 0
    %833 = vmatprep.subr.bf16.mxu0 0
    %834 = vmatpush1.bf16.xpose.msra.mxu0 0
    %835 = vmatprep.subr.bf16.mxu0 0
    %836 = vmatpush1.bf16.xpose.msra.mxu0 0
    %837 = vmatprep.subr.bf16.mxu0 0
    %838 = vmatpush1.bf16.xpose.msra.mxu0 0
    %839 = vmatprep.subr.bf16.mxu0 0
    %840 = vmatpush1.bf16.xpose.msra.mxu0 0
    %841 = vmatprep.subr.bf16.mxu0 0
    %842 = vmatpush1.bf16.xpose.msra.mxu0 0
    %843 = vmatprep.subr.bf16.mxu0 0
    %844 = vmatpush1.bf16.xpose.msra.mxu0 0
    %845 = vmatprep.subr.bf16.mxu0 0
    %846 = vmatpush1.bf16.xpose.msra.mxu0 0
    %847 = vmatprep.subr.bf16.mxu0 0
    %848 = vmatpush1.bf16.xpose.msra.mxu0 0
    %849 = vmatprep.subr.bf16.mxu0 0
    %850 = vmatpush1.bf16.xpose.msra.mxu0 0
    %851 = vmatprep.subr.bf16.mxu0 0
    %852 = vmatpush1.bf16.xpose.msra.mxu0 0
    %853 = vmatprep.subr.bf16.mxu0 0
    %854 = vmatpush1.bf16.xpose.msra.mxu0 0
    %855 = vmatprep.subr.bf16.mxu0 0
    %856 = vmatpush1.bf16.xpose.msra.mxu0 0
    %857 = vmatprep.mubr.bf16.mxu0 %v101
    %858 = vmatmul.mubr.bf16.gmra.mrb[0].mxu0 %v100
    %v859 = vpop.f32.mrb[0].mxu0
    %v860 = vadd.f32 %v820, %v859
    %v861 = vpop.f32.mrb[0].mxu0
    %v862 = vpop.f32.mrb[0].mxu0
    %v863 = vpop.f32.mrb[0].mxu0
    %864 = vdwg.mxu0
    %865 = vmatprep.subr.bf16.mxu0 %v270
    %866 = vmatpush1.bf16.xpose.msra.mxu0 %v269
    %867 = vmatprep.subr.bf16.mxu0 0
    %868 = vmatpush1.bf16.xpose.msra.mxu0 0
    %869 = vmatprep.subr.bf16.mxu0 0
    %870 = vmatpush1.bf16.xpose.msra.mxu0 0
    %871 = vmatprep.subr.bf16.mxu0 0
    %872 = vmatpush1.bf16.xpose.msra.mxu0 0
    %873 = vmatprep.subr.bf16.mxu0 0
    %874 = vmatpush1.bf16.xpose.msra.mxu0 0
    %875 = vmatprep.subr.bf16.mxu0 0
    %876 = vmatpush1.bf16.xpose.msra.mxu0 0
    %877 = vmatprep.subr.bf16.mxu0 0
    %878 = vmatpush1.bf16.xpose.msra.mxu0 0
    %879 = vmatprep.subr.bf16.mxu0 0
    %880 = vmatpush1.bf16.xpose.msra.mxu0 0
    %881 = vmatprep.subr.bf16.mxu0 0
    %882 = vmatpush1.bf16.xpose.msra.mxu0 0
    %883 = vmatprep.subr.bf16.mxu0 0
    %884 = vmatpush1.bf16.xpose.msra.mxu0 0
    %885 = vmatprep.subr.bf16.mxu0 0
    %886 = vmatpush1.bf16.xpose.msra.mxu0 0
    %887 = vmatprep.subr.bf16.mxu0 0
    %888 = vmatpush1.bf16.xpose.msra.mxu0 0
    %889 = vmatprep.subr.bf16.mxu0 0
    %890 = vmatpush1.bf16.xpose.msra.mxu0 0
    %891 = vmatprep.subr.bf16.mxu0 0
    %892 = vmatpush1.bf16.xpose.msra.mxu0 0
    %893 = vmatprep.subr.bf16.mxu0 0
    %894 = vmatpush1.bf16.xpose.msra.mxu0 0
    %895 = vmatprep.subr.bf16.mxu0 0
    %896 = vmatpush1.bf16.xpose.msra.mxu0 0
    %897 = vmatprep.mubr.bf16.mxu0 %v103
    %898 = vmatmul.mubr.bf16.gmra.mrb[0].mxu0 %v102
    %v899 = vpop.f32.mrb[0].mxu0
    %v900 = vadd.f32 %v860, %v899
    %v901 = vpop.f32.mrb[0].mxu0
    %v902 = vpop.f32.mrb[0].mxu0
    %v903 = vpop.f32.mrb[0].mxu0
    %904 = vdwg.mxu0
    %905 = vmatprep.subr.bf16.mxu0 %v272
    %906 = vmatpush1.bf16.xpose.msra.mxu0 %v271
    %907 = vmatprep.subr.bf16.mxu0 0
    %908 = vmatpush1.bf16.xpose.msra.mxu0 0
    %909 = vmatprep.subr.bf16.mxu0 0
    %910 = vmatpush1.bf16.xpose.msra.mxu0 0
    %911 = vmatprep.subr.bf16.mxu0 0
    %912 = vmatpush1.bf16.xpose.msra.mxu0 0
    %913 = vmatprep.subr.bf16.mxu0 0
    %914 = vmatpush1.bf16.xpose.msra.mxu0 0
    %915 = vmatprep.subr.bf16.mxu0 0
    %916 = vmatpush1.bf16.xpose.msra.mxu0 0
    %917 = vmatprep.subr.bf16.mxu0 0
    %918 = vmatpush1.bf16.xpose.msra.mxu0 0
    %919 = vmatprep.subr.bf16.mxu0 0
    %920 = vmatpush1.bf16.xpose.msra.mxu0 0
    %921 = vmatprep.subr.bf16.mxu0 0
    %922 = vmatpush1.bf16.xpose.msra.mxu0 0
    %923 = vmatprep.subr.bf16.mxu0 0
    %924 = vmatpush1.bf16.xpose.msra.mxu0 0
    %925 = vmatprep.subr.bf16.mxu0 0
    %926 = vmatpush1.bf16.xpose.msra.mxu0 0
    %927 = vmatprep.subr.bf16.mxu0 0
    %928 = vmatpush1.bf16.xpose.msra.mxu0 0
    %929 = vmatprep.subr.bf16.mxu0 0
    %930 = vmatpush1.bf16.xpose.msra.mxu0 0
    %931 = vmatprep.subr.bf16.mxu0 0
    %932 = vmatpush1.bf16.xpose.msra.mxu0 0
    %933 = vmatprep.subr.bf16.mxu0 0
    %934 = vmatpush1.bf16.xpose.msra.mxu0 0
    %935 = vmatprep.subr.bf16.mxu0 0
    %936 = vmatpush1.bf16.xpose.msra.mxu0 0
    %937 = vmatprep.mubr.bf16.mxu0 %v105
    %938 = vmatmul.mubr.bf16.gmra.mrb[0].mxu0 %v104
    %v939 = vpop.f32.mrb[0].mxu0
    %v940 = vadd.f32 %v900, %v939
    %v941 = vpop.f32.mrb[0].mxu0
    %v942 = vpop.f32.mrb[0].mxu0
    %v943 = vpop.f32.mrb[0].mxu0
    %944 = vdwg.mxu0
    %vm945 = vcmask 130048
    %946 = vst.msk [vmem:[#allocation7] sm:$0xff] %vm945, %v940
    // Predicated region
    $region22: #{tpu_custom_call.1} parent=1 // pred_check
      _
    $region23: #{tpu_custom_call.1} parent=1 // pred_check_branch
      %948 = sbr.rel (0) target = $region25
    $region24: #{tpu_custom_call.1} parent=1 // pred_region
      %s950 = ssub.s32 128, 128
      %951 = vsyncadd [#allocation4], %s950
      %s953 = sshll.u32 [#allocation7], 4
      %s954 = int_to_ptr.vmem [resolvable:$true] %s953
      %956 = dma.vmem_to_hbm [thread:$0]  %s954, 128, %s3, [#allocation4]
    $region25: #{tpu_custom_call.1} parent=1 // pred_fallthru
      _
    // Predicated region
    $region26: #{tpu_custom_call.1} parent=1 // pred_check
      _
    $region27: #{tpu_custom_call.1} parent=1 // pred_check_branch
      %958 = sbr.rel (0) target = $region29
    $region28: #{tpu_custom_call.1} parent=1 // pred_region
      %959 = dma.done [#allocation4], 128
    $region29: #{tpu_custom_call.1} parent=1 // pred_fallthru
      _
    %960 = vsyncpa [#allocation3], 1
    %961 = vsyncpa [#allocation6], 1
    %962 = vsyncpa [#allocation4], 1

</llo_original>
